<compile_context>
chip_gen: v7x
topology: tpu7x:2x2x1
jax: 0.10.0
libtpu: 0.0.40
codegen_flags: <defaults>
</compile_context>

<pallas_src>
import math

import jax
import jax.numpy as jnp
from jax.experimental import pallas as pl
from jax.experimental.pallas import tpu as pltpu


def _copy_kernel(x_ref, o_ref):
    # Pure lane-dense identity copy; no reshape / relayout inside the kernel.
    o_ref[...] = x_ref[...]


# ~2 MiB per block: input + output, each double-buffered => ~8 MiB of VMEM.
_TARGET_BLOCK_BYTES = 2 * 1024 * 1024


def _choose_slab(total_elems):
    """Pick a (rows, cols) slab with cols a big multiple of 128, if possible."""
    for cols in (2048, 1024, 512, 256, 128):
        if total_elems % cols == 0:
            return total_elems // cols, cols
    return None


def _row_tile(rows, cols, itemsize):
    """Rows per block: ~_TARGET_BLOCK_BYTES, multiple of 8 sublanes, <= rows."""
    tr = _TARGET_BLOCK_BYTES // max(1, cols * itemsize)
    tr = max(8, (tr // 8) * 8)
    tr = min(tr, rows)
    if rows < 8:
        tr = rows  # block extent == full array extent along sublanes -> legal
    return tr


def _copy_2d(x2: jax.Array) -> jax.Array:
    """Row-tiled, software-pipelined identity copy of a 2-D slab."""
    rows, cols = x2.shape
    itemsize = jnp.dtype(x2.dtype).itemsize
    tr = _row_tile(rows, cols, itemsize)
    cost = pl.CostEstimate(
        flops=0, transcendentals=0, bytes_accessed=2 * rows * cols * itemsize
    )
    return pl.pallas_call(
        _copy_kernel,
        out_shape=jax.ShapeDtypeStruct((rows, cols), x2.dtype),
        grid_spec=pltpu.PrefetchScalarGridSpec(
            num_scalar_prefetch=0,
            grid=(pl.cdiv(rows, tr),),
            in_specs=[pl.BlockSpec((tr, cols), lambda i: (i, 0))],
            out_specs=pl.BlockSpec((tr, cols), lambda i: (i, 0)),
        ),
        compiler_params=pltpu.CompilerParams(
            dimension_semantics=("parallel",),
        ),
        cost_estimate=cost,
    )(x2)


def flatten(x: jax.Array) -> jax.Array:
    """x: (B, ...) -> (B, prod(rest)), identical to torch .view(B, -1)."""
    b = x.shape[0]
    flat = math.prod(x.shape[1:]) if x.ndim > 1 else 1
    total = b * flat

    slab = _choose_slab(total)
    if slab is not None:
        # Lane-dense slab: cols is a large multiple of 128 -> unmasked stores.
        rows, cols = slab
        out = _copy_2d(x.reshape(rows, cols))   # metadata-only view in
        return out.reshape(b, flat)             # metadata-only view out

    # Fallback (total not a multiple of 128): tile rows of (B, flat).  The
    # block's last dim equals the full array dim, which is always legal even
    # when flat % 128 != 0; masked stores on the ragged lanes are unavoidable.
    return _copy_2d(x.reshape(b, flat))


if __name__ == "__main__":
    key = jax.random.PRNGKey(0)
    # Small NCHW input consistent with how Flatten is used after convs.
    x = jax.random.normal(key, (2, 4, 16, 16), dtype=jnp.float32)

    out = jax.block_until_ready(flatten(x))

    # Reference: plain JAX reshape (== torch .view on contiguous NCHW).
    ref = x.reshape(x.shape[0], -1)
    assert out.shape == (2, 4 * 16 * 16), out.shape
    assert out.dtype == x.dtype
    assert jnp.array_equal(out, ref), "Pallas flatten mismatch vs reference"

    print("KERNEL_OK")
</pallas_src>

<mosaic_0001>
module attributes {stable_mosaic.version = 11 : i64} {
  func.func @_copy_kernel(%arg0: i32, %arg1: memref<1x2048xf32, #tpu.memory_space<vmem>>, %arg2: memref<1x2048xf32, #tpu.memory_space<vmem>>) attributes {dimension_semantics = [#tpu.dimension_semantics<parallel>], iteration_bounds = array<i64: 1>, scalar_prefetch = 0 : i64, scratch_operands = 0 : i64, tpu.core_type = #tpu.core_type<tc>, window_params = [{transform_indices = @transform_0, window_bounds = array<i64: 1, 2048>}, {transform_indices = @transform_1, window_bounds = array<i64: 1, 2048>}]} {
    %c0 = arith.constant 0 : index
    %c0_0 = arith.constant 0 : index
    %0 = vector.load %arg1[%c0, %c0_0] : memref<1x2048xf32, #tpu.memory_space<vmem>>, vector<1x2048xf32>
    %c0_1 = arith.constant 0 : index
    %c0_2 = arith.constant 0 : index
    %1 = vector.load %arg2[%c0_1, %c0_2] : memref<1x2048xf32, #tpu.memory_space<vmem>>, vector<1x2048xf32>
    tpu.vector_store %arg2[%c0_1, %c0_2], %0 {strides = array<i32>} : memref<1x2048xf32, #tpu.memory_space<vmem>>, vector<1x2048xf32>,
    return
  }
  func.func @transform_0(%arg0: i32) -> (i32, i32) {
    %c0_i32 = arith.constant 0 : i32
    %c0_i32_0 = arith.constant 0 : i32
    return %arg0, %c0_i32 : i32, i32
  }
  func.func @transform_1(%arg0: i32) -> (i32, i32) {
    %c0_i32 = arith.constant 0 : i32
    %c0_i32_0 = arith.constant 0 : i32
    return %arg0, %c0_i32 : i32, i32
  }
}

</mosaic_0001>

<llo_original>
// kernel: tpu_custom_call.1
$region0: #{tpu_custom_call.1}
  #allocation0 [shape = 'u32[]', space=smem, size = 0x4, offset = 0x4, fixed_abs, tag = 'smem constant byte address 0x4 - core index']
  #allocation1 [shape = 'u32[144,128]{1,0:T(1,128)}', space=vmem, size = 0x12000, scoped, tag = 'internal scratch']
  %s0 = inlined_call_operand.hbm [shape: f32[1,2048], index: 0, kind: input, shape index: {}]
  %s1 = inlined_call_operand.hbm [shape: f32[1,2048], index: 1, kind: output, shape index: {}]
  %s2 = sld [smem:[#allocation0]]
  $region18: #{tpu_custom_call.1} parent=0
    _
  %s4 = ssub.s32 1, %s2
  %s5 = scalar_select 0, %s4, %s2
  $region1: #{tpu_custom_call.1} parent=0
    #allocation2 [shape = 'u8[8192]{0}', space=vmem, size = 0x2000, scoped, tag = 'input window, operand 0, single buffered']
    #allocation3 [shape = 's32[1]{0}', space=sflag, size = 0x4, scoped, tag = 'scoped memory for tpu_custom_call.1']
    #allocation4 [shape = 's32[1]{0}', space=sflag, size = 0x4, scoped, tag = 'scoped memory for tpu_custom_call.1']
    #allocation5 [shape = 'u8[8192]{0}', space=vmem, size = 0x2000, scoped, tag = 'output window, operand 0, single buffered']
    %6 = vsyncpa [#allocation3], 0
    %7 = vsyncpa [#allocation4], 0
    // Predicated region
    $region2: #{tpu_custom_call.1} parent=1 // pred_check
      _
    $region3: #{tpu_custom_call.1} parent=1 // pred_check_branch
      %9 = sbr.rel (0) target = $region5
    $region4: #{tpu_custom_call.1} parent=1 // pred_region
      %s11 = ssub.s32 256, 256
      %12 = vsyncadd [#allocation3], %s11
      %s14 = sshll.u32 [#allocation2], 4
      %s15 = int_to_ptr.vmem [resolvable:$true] %s14
      %17 = dma.hbm_to_vmem [thread:$0]  %s0, 256, %s15, [#allocation3]
    $region5: #{tpu_custom_call.1} parent=1 // pred_fallthru
      _
    // Predicated region
    $region6: #{tpu_custom_call.1} parent=1 // pred_check
      _
    $region7: #{tpu_custom_call.1} parent=1 // pred_check_branch
      %19 = sbr.rel (0) target = $region9
    $region8: #{tpu_custom_call.1} parent=1 // pred_region
      %20 = dma.done [#allocation3], 256
    $region9: #{tpu_custom_call.1} parent=1 // pred_fallthru
      _
    %v21 = vld [vmem:[#allocation2] sm:$0xff]
    %v22 = vld [vmem:[#allocation2 + $0x8] sm:$0xff]
    %23 = vst [vmem:[#allocation5] sm:$0xff] %v21
    %24 = vst [vmem:[#allocation5 + $0x8] sm:$0xff] %v22
    // Predicated region
    $region10: #{tpu_custom_call.1} parent=1 // pred_check
      _
    $region11: #{tpu_custom_call.1} parent=1 // pred_check_branch
      %26 = sbr.rel (0) target = $region13
    $region12: #{tpu_custom_call.1} parent=1 // pred_region
      %s28 = ssub.s32 256, 256
      %29 = vsyncadd [#allocation4], %s28
      %s31 = sshll.u32 [#allocation5], 4
      %s32 = int_to_ptr.vmem [resolvable:$true] %s31
      %34 = dma.vmem_to_hbm [thread:$0]  %s32, 256, %s1, [#allocation4]
    $region13: #{tpu_custom_call.1} parent=1 // pred_fallthru
      _
    // Predicated region
    $region14: #{tpu_custom_call.1} parent=1 // pred_check
      _
    $region15: #{tpu_custom_call.1} parent=1 // pred_check_branch
      %36 = sbr.rel (0) target = $region17
    $region16: #{tpu_custom_call.1} parent=1 // pred_region
      %37 = dma.done [#allocation4], 256
    $region17: #{tpu_custom_call.1} parent=1 // pred_fallthru
      _
    %38 = vsyncpa [#allocation3], 1
    %39 = vsyncpa [#allocation4], 1

</llo_original>
